<compile_context>
chip_gen: v5e
topology: v5e:2x2
jax: 0.10.0
libtpu: 0.0.40
codegen_flags: <defaults>
</compile_context>

<pallas_src>
import jax
import jax.numpy as jnp
from jax.experimental import pallas as pl
from jax.experimental.pallas import tpu as pltpu

EPSILON = 1e-6


def _round_up(x, m):
    return ((x + m - 1) // m) * m


def _iou_kernel(pred_ref, true_ref, iou_ref, inter_acc, sqd_acc):
    # pred_ref / true_ref: (row_blk, tile_s) VMEM tiles (input dtype)
    # iou_ref:             (row_blk, 128) f32 lane-dense output (per-row IoU)
    # inter_acc, sqd_acc:  (row_blk, 1) f32 accumulators (persist over k axis)
    k = pl.program_id(1)

    @pl.when(k == 0)
    def _init():
        inter_acc[...] = jnp.zeros_like(inter_acc)
        sqd_acc[...] = jnp.zeros_like(sqd_acc)

    p = pred_ref[...]
    t = true_ref[...]

    # Two products / two lane reductions per tile; accumulate in f32.
    #   inter       = sum(t * p)
    #   sumsq_diff  = sum((t - p)^2)
    #   union       = sum(t^2) + sum(p^2) - inter = sumsq_diff + inter
    inter_acc[...] += jnp.sum((t * p).astype(jnp.float32), axis=-1, keepdims=True)
    d = t - p
    sqd_acc[...] += jnp.sum((d * d).astype(jnp.float32), axis=-1, keepdims=True)

    @pl.when(k == pl.num_programs(1) - 1)
    def _finalize():
        inter = inter_acc[...]                       # (row_blk, 1)
        union = sqd_acc[...] + inter                 # (row_blk, 1)
        iou = (inter + EPSILON) / (union + EPSILON)  # exact divide (precision)
        iou_ref[...] = jnp.broadcast_to(iou, iou_ref.shape)


def iou_loss(y_pred, y_true):
    """Pallas implementation of IoULoss.forward.

    y_pred, y_true: (B, C, H, W) arrays (NCHW, matching the PyTorch module).
    Returns a scalar float32 loss = 1 - mean IoU over (B, C).
    """
    assert y_pred.shape == y_true.shape
    B, C, H, W = y_pred.shape
    rows, cols = B * C, H * W

    pred2d = y_pred.reshape(rows, cols)
    true2d = y_true.reshape(rows, cols)

    itemsize = jnp.dtype(y_pred.dtype).itemsize

    # Row block: multiple of 8 (sublane), capped so multiple row blocks exist
    # for larger B*C (gives the v7x megacore a parallel axis to split).
    row_blk = min(_round_up(rows, 8), 128)
    rows_p = _round_up(rows, row_blk)

    # Lane tile: multiple of 128, large enough to amortize per-step overhead,
    # small enough that 2 inputs x 2 pipeline buffers stay under ~8 MiB.
    input_buf_budget = 8 * 1024 * 1024
    max_tile = (input_buf_budget // (4 * itemsize * row_blk) // 128) * 128
    tile_s = min(_round_up(cols, 128), 4096, max(max_tile, 128))
    cols_p = _round_up(cols, tile_s)

    if (rows_p, cols_p) != (rows, cols):
        pad = ((0, rows_p - rows), (0, cols_p - cols))
        # Zero padding contributes nothing to the sums; padded rows are
        # sliced away before the final mean, so they never bias the loss.
        pred2d = jnp.pad(pred2d, pad)
        true2d = jnp.pad(true2d, pad)

    grid = (rows_p // row_blk, cols_p // tile_s)

    iou_padded = pl.pallas_call(
        _iou_kernel,
        out_shape=jax.ShapeDtypeStruct((rows_p, 128), jnp.float32),
        grid_spec=pltpu.PrefetchScalarGridSpec(
            num_scalar_prefetch=0,
            grid=grid,
            in_specs=[
                pl.BlockSpec((row_blk, tile_s), lambda i, k: (i, k)),
                pl.BlockSpec((row_blk, tile_s), lambda i, k: (i, k)),
            ],
            out_specs=pl.BlockSpec((row_blk, 128), lambda i, k: (i, 0)),
            scratch_shapes=[
                pltpu.VMEM((row_blk, 1), jnp.float32),  # inter accumulator
                pltpu.VMEM((row_blk, 1), jnp.float32),  # sum((t-p)^2) accumulator
            ],
        ),
        compiler_params=pltpu.CompilerParams(
            dimension_semantics=("parallel", "arbitrary"),
        ),
    )(pred2d, true2d)

    # Tiny finalization (mean over B*C scalars and 1 - mean) in the wrapper,
    # using only the true rows and lane 0 of the lane-dense IoU output.
    iou = iou_padded[:rows, 0]
    return (1.0 - jnp.mean(iou)).astype(jnp.float32)


def iou_loss_ref(y_pred, y_true):
    """Pure-JAX reference mirroring the PyTorch code."""
    op_sum = lambda x: x.sum(-1).sum(-1)
    inter = op_sum(y_true * y_pred)
    union = op_sum(y_true ** 2) + op_sum(y_pred ** 2) - op_sum(y_true * y_pred)
    iou = (inter + EPSILON) / (union + EPSILON)
    return 1.0 - jnp.mean(iou)


if __name__ == "__main__":
    key = jax.random.PRNGKey(0)
    k1, k2 = jax.random.split(key)

    B, C, H, W = 2, 4, 16, 16
    # Sigmoid-ish positive values so IoU is well behaved (like seg masks).
    y_pred = jax.nn.sigmoid(jax.random.normal(k1, (B, C, H, W), jnp.float32))
    y_true = (jax.random.uniform(k2, (B, C, H, W), jnp.float32) > 0.5).astype(jnp.float32)

    loss = iou_loss(y_pred, y_true)
    jax.block_until_ready(loss)

    ref = iou_loss_ref(y_pred, y_true)
    assert jnp.allclose(loss, ref, rtol=1e-5, atol=1e-5), (loss, ref)

    print("KERNEL_OK")
</pallas_src>

<mosaic_0001>
module attributes {stable_mosaic.version = 11 : i64} {
  func.func @_iou_kernel(%arg0: i32, %arg1: i32, %arg2: memref<8x256xf32, #tpu.memory_space<vmem>>, %arg3: memref<8x256xf32, #tpu.memory_space<vmem>>, %arg4: memref<8x128xf32, #tpu.memory_space<vmem>>, %arg5: memref<8x1xf32, #tpu.memory_space<vmem>>, %arg6: memref<8x1xf32, #tpu.memory_space<vmem>>) attributes {dimension_semantics = [#tpu.dimension_semantics<parallel>, #tpu.dimension_semantics<arbitrary>], iteration_bounds = array<i64: 1, 1>, scalar_prefetch = 0 : i64, scratch_operands = 2 : i64, tpu.core_type = #tpu.core_type<tc>, window_params = [{transform_indices = @transform_0, window_bounds = array<i64: 8, 256>}, {transform_indices = @transform_1, window_bounds = array<i64: 8, 256>}, {transform_indices = @transform_2, window_bounds = array<i64: 8, 128>}]} {
    %c0_i32 = arith.constant 0 : i32
    %0 = arith.cmpi eq, %arg1, %c0_i32 : i32
    %1 = arith.extui %0 : i1 to i32
    %c0_i32_0 = arith.constant 0 : i32
    %2 = arith.cmpi ne, %1, %c0_i32_0 : i32
    scf.if %2 {
      %cst_15 = arith.constant 0.000000e+00 : f32
      %21 = vector.broadcast %cst_15 : f32 to vector<8x1xf32>
      %c0_16 = arith.constant 0 : index
      %c0_17 = arith.constant 0 : index
      %22 = vector.load %arg5[%c0_16, %c0_17] : memref<8x1xf32, #tpu.memory_space<vmem>>, vector<8x1xf32>
      tpu.vector_store %arg5[%c0_16, %c0_17], %21 {strides = array<i32>} : memref<8x1xf32, #tpu.memory_space<vmem>>, vector<8x1xf32>,
      %cst_18 = arith.constant 0.000000e+00 : f32
      %23 = vector.broadcast %cst_18 : f32 to vector<8x1xf32>
      %c0_19 = arith.constant 0 : index
      %c0_20 = arith.constant 0 : index
      %24 = vector.load %arg6[%c0_19, %c0_20] : memref<8x1xf32, #tpu.memory_space<vmem>>, vector<8x1xf32>
      tpu.vector_store %arg6[%c0_19, %c0_20], %23 {strides = array<i32>} : memref<8x1xf32, #tpu.memory_space<vmem>>, vector<8x1xf32>,
    } else {
    }
    %c0 = arith.constant 0 : index
    %c0_1 = arith.constant 0 : index
    %3 = vector.load %arg2[%c0, %c0_1] : memref<8x256xf32, #tpu.memory_space<vmem>>, vector<8x256xf32>
    %c0_2 = arith.constant 0 : index
    %c0_3 = arith.constant 0 : index
    %4 = vector.load %arg3[%c0_2, %c0_3] : memref<8x256xf32, #tpu.memory_space<vmem>>, vector<8x256xf32>
    %c0_4 = arith.constant 0 : index
    %c0_5 = arith.constant 0 : index
    %5 = vector.load %arg5[%c0_4, %c0_5] : memref<8x1xf32, #tpu.memory_space<vmem>>, vector<8x1xf32>
    %6 = arith.mulf %4, %3 : vector<8x256xf32>
    %cst = arith.constant dense<0.000000e+00> : vector<8xf32>
    %7 = vector.multi_reduction <add>, %6, %cst [1] : vector<8x256xf32> to vector<8xf32>
    %8 = vector.shape_cast %7 : vector<8xf32> to vector<8x1xf32>
    %9 = arith.addf %5, %8 : vector<8x1xf32>
    %c0_6 = arith.constant 0 : index
    %c0_7 = arith.constant 0 : index
    %10 = vector.load %arg5[%c0_6, %c0_7] : memref<8x1xf32, #tpu.memory_space<vmem>>, vector<8x1xf32>
    tpu.vector_store %arg5[%c0_6, %c0_7], %9 {strides = array<i32>} : memref<8x1xf32, #tpu.memory_space<vmem>>, vector<8x1xf32>,
    %11 = arith.subf %4, %3 : vector<8x256xf32>
    %c0_8 = arith.constant 0 : index
    %c0_9 = arith.constant 0 : index
    %12 = vector.load %arg6[%c0_8, %c0_9] : memref<8x1xf32, #tpu.memory_space<vmem>>, vector<8x1xf32>
    %13 = arith.mulf %11, %11 : vector<8x256xf32>
    %cst_10 = arith.constant dense<0.000000e+00> : vector<8xf32>
    %14 = vector.multi_reduction <add>, %13, %cst_10 [1] : vector<8x256xf32> to vector<8xf32>
    %15 = vector.shape_cast %14 : vector<8xf32> to vector<8x1xf32>
    %16 = arith.addf %12, %15 : vector<8x1xf32>
    %c0_11 = arith.constant 0 : index
    %c0_12 = arith.constant 0 : index
    %17 = vector.load %arg6[%c0_11, %c0_12] : memref<8x1xf32, #tpu.memory_space<vmem>>, vector<8x1xf32>
    tpu.vector_store %arg6[%c0_11, %c0_12], %16 {strides = array<i32>} : memref<8x1xf32, #tpu.memory_space<vmem>>, vector<8x1xf32>,
    %c0_i32_13 = arith.constant 0 : i32
    %18 = arith.cmpi eq, %arg1, %c0_i32_13 : i32
    %19 = arith.extui %18 : i1 to i32
    %c0_i32_14 = arith.constant 0 : i32
    %20 = arith.cmpi ne, %19, %c0_i32_14 : i32
    scf.if %20 {
      %c0_15 = arith.constant 0 : index
      %c0_16 = arith.constant 0 : index
      %21 = vector.load %arg5[%c0_15, %c0_16] : memref<8x1xf32, #tpu.memory_space<vmem>>, vector<8x1xf32>
      %c0_17 = arith.constant 0 : index
      %c0_18 = arith.constant 0 : index
      %22 = vector.load %arg6[%c0_17, %c0_18] : memref<8x1xf32, #tpu.memory_space<vmem>>, vector<8x1xf32>
      %23 = arith.addf %22, %21 : vector<8x1xf32>
      %cst_19 = arith.constant 9.99999997E-7 : f32
      %24 = vector.broadcast %cst_19 : f32 to vector<8x1xf32>
      %25 = arith.addf %21, %24 : vector<8x1xf32>
      %cst_20 = arith.constant 9.99999997E-7 : f32
      %26 = vector.broadcast %cst_20 : f32 to vector<8x1xf32>
      %27 = arith.addf %23, %26 : vector<8x1xf32>
      %28 = arith.divf %25, %27 : vector<8x1xf32>
      %29 = vector.shape_cast %28 : vector<8x1xf32> to vector<8x1xf32>
      %30 = vector.broadcast %29 : vector<8x1xf32> to vector<8x128xf32>
      %c0_21 = arith.constant 0 : index
      %c0_22 = arith.constant 0 : index
      %31 = vector.load %arg4[%c0_21, %c0_22] : memref<8x128xf32, #tpu.memory_space<vmem>>, vector<8x128xf32>
      tpu.vector_store %arg4[%c0_21, %c0_22], %30 {strides = array<i32>} : memref<8x128xf32, #tpu.memory_space<vmem>>, vector<8x128xf32>,
    } else {
    }
    return
  }
  func.func @transform_0(%arg0: i32, %arg1: i32) -> (i32, i32) {
    %c0_i32 = arith.constant 0 : i32
    return %arg0, %arg1 : i32, i32
  }
  func.func @transform_1(%arg0: i32, %arg1: i32) -> (i32, i32) {
    %c0_i32 = arith.constant 0 : i32
    return %arg0, %arg1 : i32, i32
  }
  func.func @transform_2(%arg0: i32, %arg1: i32) -> (i32, i32) {
    %c0_i32 = arith.constant 0 : i32
    %c0_i32_0 = arith.constant 0 : i32
    return %arg0, %c0_i32 : i32, i32
  }
}

</mosaic_0001>

<llo_original>
// kernel: tpu_custom_call.1
$region0: #{tpu_custom_call.1}
  #allocation0 [shape = 'u32[]', space=smem, size = 0x4, offset = 0x4, fixed_abs, tag = 'smem constant byte address 0x4 - core index']
  #allocation1 [shape = 'u32[72,128]{1,0:T(1,128)}', space=vmem, size = 0x9000, scoped, tag = 'internal scratch']
  #allocation2 [shape = 'f32[8,1]{1,0:T(8,128)}', space=vmem, size = 0x1000, scoped, tag = 'scratch operand']
  #allocation3 [shape = 'f32[8,1]{1,0:T(8,128)}', space=vmem, size = 0x1000, scoped, tag = 'scratch operand']
  %s0 = inlined_call_operand.hbm [shape: f32[8,256], index: 0, kind: input, shape index: {}]
  %s1 = inlined_call_operand.hbm [shape: f32[8,256], index: 1, kind: input, shape index: {}]
  %s2 = inlined_call_operand.hbm [shape: f32[8,128], index: 2, kind: output, shape index: {}]
  %s3 = sld [smem:[#allocation0]]
  $region34: #{tpu_custom_call.1} parent=0
    _
  %s5 = ssub.s32 1, %s3
  %s6 = scalar_select 0, %s5, %s3
  $region1: #{tpu_custom_call.1} parent=0
    #allocation4 [shape = 'u8[8192]{0}', space=vmem, size = 0x2000, scoped, tag = 'input window, operand 0, single buffered']
    #allocation5 [shape = 's32[1]{0}', space=sflag, size = 0x4, scoped, tag = 'scoped memory for tpu_custom_call.1']
    #allocation6 [shape = 's32[1]{0}', space=sflag, size = 0x4, scoped, tag = 'scoped memory for tpu_custom_call.1']
    #allocation7 [shape = 'u8[8192]{0}', space=vmem, size = 0x2000, scoped, tag = 'input window, operand 1, single buffered']
    #allocation8 [shape = 's32[1]{0}', space=sflag, size = 0x4, scoped, tag = 'scoped memory for tpu_custom_call.1']
    #allocation9 [shape = 'u8[4096]{0}', space=vmem, size = 0x1000, scoped, tag = 'output window, operand 0, single buffered']
    %7 = vsyncpa [#allocation5], 0
    %8 = vsyncpa [#allocation8], 0
    %9 = vsyncpa [#allocation6], 0
    // Predicated region
    $region2: #{tpu_custom_call.1} parent=1 // pred_check
      _
    $region3: #{tpu_custom_call.1} parent=1 // pred_check_branch
      %11 = sbr.rel (0) target = $region5
    $region4: #{tpu_custom_call.1} parent=1 // pred_region
      %13 = vsyncadd [#allocation5], 0
      %s15 = sshll.u32 %s0, 4
      %s16 = int_to_ptr.hbm [resolvable:$true] %s15
      %s17 = sshll.u32 [#allocation4], 4
      %s18 = int_to_ptr.vmem [resolvable:$true] %s17
      %20 = dma.hbm_to_vmem [thread:$0]  %s16, 256, %s18, [#allocation5]
    $region5: #{tpu_custom_call.1} parent=1 // pred_fallthru
      _
    // Predicated region
    $region6: #{tpu_custom_call.1} parent=1 // pred_check
      _
    $region7: #{tpu_custom_call.1} parent=1 // pred_check_branch
      %22 = sbr.rel (0) target = $region9
    $region8: #{tpu_custom_call.1} parent=1 // pred_region
      %24 = vsyncadd [#allocation8], 0
      %s26 = sshll.u32 %s1, 4
      %s27 = int_to_ptr.hbm [resolvable:$true] %s26
      %s28 = sshll.u32 [#allocation7], 4
      %s29 = int_to_ptr.vmem [resolvable:$true] %s28
      %31 = dma.hbm_to_vmem [thread:$0]  %s27, 256, %s29, [#allocation8]
    $region9: #{tpu_custom_call.1} parent=1 // pred_fallthru
      _
    // Predicated region
    $region10: #{tpu_custom_call.1} parent=1 // pred_check
      _
    $region11: #{tpu_custom_call.1} parent=1 // pred_check_branch
      %33 = sbr.rel (0) target = $region13
    $region12: #{tpu_custom_call.1} parent=1 // pred_region
      %35 = dma.done [#allocation5], 256
    $region13: #{tpu_custom_call.1} parent=1 // pred_fallthru
      _
    // Predicated region
    $region14: #{tpu_custom_call.1} parent=1 // pred_check
      _
    $region15: #{tpu_custom_call.1} parent=1 // pred_check_branch
      %37 = sbr.rel (0) target = $region17
    $region16: #{tpu_custom_call.1} parent=1 // pred_region
      %39 = dma.done [#allocation8], 256
    $region17: #{tpu_custom_call.1} parent=1 // pred_fallthru
      _
    %p40 = scmp.eq.s32.totalorder 0, 0
    // Predicated region
    $region18: #{tpu_custom_call.1} parent=1 // pred_check
      %p41 = pneg %p40
    $region19: #{tpu_custom_call.1} parent=1 // pred_check_branch
      %43 = sbr.rel (%p41) target = $region21
    $region20: #{tpu_custom_call.1} parent=1 // pred_region
      %vm44 = vcmask 7168
      %45 = vst.msk [vmem:[#allocation2] sm:$0xff] %vm44, 0.0
      %46 = vst.msk [vmem:[#allocation3] sm:$0xff] %vm44, 0.0
    $region21: #{tpu_custom_call.1} parent=1 // pred_fallthru
      _
    %v47 = vld [vmem:[#allocation4] sm:$0xff]
    %v48 = vld [vmem:[#allocation4 + $0x8] sm:$0xff]
    %v49 = vld [vmem:[#allocation7] sm:$0xff]
    %v50 = vld [vmem:[#allocation7 + $0x8] sm:$0xff]
    %v51 = vld [vmem:[#allocation2] sm:$0xff]
    %v52 = vmul.f32 %v49, %v47
    %v53 = vmul.f32 %v50, %v48
    %v54 = vadd.f32 %v52, %v53
    %55 = vadd.xlane.f32.xlu0 %v54
    %v56 = vpop.xlane.xlu0 %55
    %v57 = vadd.f32 %v51, %v56
    %vm58 = vcmask 7168
    %59 = vst.msk [vmem:[#allocation2] sm:$0xff] %vm58, %v57
    %v60 = vsub.f32 %v49, %v47
    %v61 = vsub.f32 %v50, %v48
    %v62 = vld [vmem:[#allocation3] sm:$0xff]
    %v63 = vmul.f32 %v60, %v60
    %v64 = vmul.f32 %v61, %v61
    %v65 = vadd.f32 %v63, %v64
    %66 = vadd.xlane.f32.xlu0 %v65
    %v67 = vpop.xlane.xlu0 %66
    %v68 = vadd.f32 %v62, %v67
    %69 = vst.msk [vmem:[#allocation3] sm:$0xff] %vm58, %v68
    // Predicated region
    $region22: #{tpu_custom_call.1} parent=1 // pred_check
      %p70 = pneg %p40
    $region23: #{tpu_custom_call.1} parent=1 // pred_check_branch
      %72 = sbr.rel (%p70) target = $region25
    $region24: #{tpu_custom_call.1} parent=1 // pred_region
      %v73 = vld [vmem:[#allocation2] sm:$0xff]
      %v74 = vld [vmem:[#allocation3] sm:$0xff]
      %v75 = vadd.f32 %v74, %v73
      %v76 = vadd.f32 %v73, 1e-06
      %v77 = vadd.f32 %v75, 1e-06
      %v78 = vrcp.pop %v77
      %v79 = vmul.f32 %v77, %v78
      %v80 = vsub.f32 1.0, %v79
      %v81 = vmul.f32 %v78, %v80
      %v82 = vadd.f32 %v78, %v81
      %vm83 = vweird.f32 %v77
      %vm84 = vweird.f32 %v78
      %vm85 = vmor %vm83, %vm84
      %v86 = vsel %vm85, %v78, %v82
      %v87 = vand.u32 2147483647, %v77
      %vm88 = vcmp.eq.f32.partialorder %v87, 8.507059e+37
      %v89 = vand.u32 %v77, 2147483648
      %v90 = vor.u32 1.1754944e-38, %v89
      %v91 = vsel %vm88, %v90, %v86
      %v92 = vmul.f32 %v76, %v91
      %94 = vset.pattern.permute.xlu0 0
      %95 = vperm.xlu0 %94, %v92
      %v96 = vpop.permute.xlu0 %95
      %98 = vst [vmem:[#allocation9] sm:$0xff] %v96
    $region25: #{tpu_custom_call.1} parent=1 // pred_fallthru
      _
    // Predicated region
    $region26: #{tpu_custom_call.1} parent=1 // pred_check
      _
    $region27: #{tpu_custom_call.1} parent=1 // pred_check_branch
      %100 = sbr.rel (0) target = $region29
    $region28: #{tpu_custom_call.1} parent=1 // pred_region
      %102 = vsyncadd [#allocation6], 0
      %s104 = sshll.u32 [#allocation9], 4
      %s105 = int_to_ptr.vmem [resolvable:$true] %s104
      %s106 = sshll.u32 %s2, 4
      %s107 = int_to_ptr.hbm [resolvable:$true] %s106
      %109 = dma.vmem_to_hbm [thread:$0]  %s105, 128, %s107, [#allocation6]
    $region29: #{tpu_custom_call.1} parent=1 // pred_fallthru
      _
    // Predicated region
    $region30: #{tpu_custom_call.1} parent=1 // pred_check
      _
    $region31: #{tpu_custom_call.1} parent=1 // pred_check_branch
      %111 = sbr.rel (0) target = $region33
    $region32: #{tpu_custom_call.1} parent=1 // pred_region
      %113 = dma.done [#allocation6], 128
    $region33: #{tpu_custom_call.1} parent=1 // pred_fallthru
      _
    %114 = vsyncpa [#allocation5], 1
    %115 = vsyncpa [#allocation8], 1
    %116 = vsyncpa [#allocation6], 1

</llo_original>
